<compile_context>
chip_gen: v7x
topology: tpu7x:2x2x1
jax: 0.10.0
libtpu: 0.0.40
codegen_flags: <defaults>
</compile_context>

<pallas_src>
import functools

import jax
import jax.numpy as jnp
from jax.experimental import pallas as pl
from jax.experimental.pallas import tpu as pltpu

IGNORE_LABEL = 255
CLASS_W0 = 0.15   # SegLoss class weights (nn.CrossEntropyLoss weight=[0.15, 0.85])
CLASS_W1 = 0.85

# Accumulator rows in the per-image (8, 8, 128) output:
#   0: sum w[t]*valid*nll   (SegLoss numerator)
#   1: sum w[t]*valid       (SegLoss denominator)
#   2: sum -log(edge)   over pos_mask
#   3: sum -log(1-edge) over neg_mask
#   4: pos_mask count
#   5: neg_mask count
#   6: valid (mask) count
#   7: unused (zero)


def _full_loss_kernel(seg_ref, edge_ref, target_ref, boundary_ref, out_ref,
                      *, ignore_label, w0, w1):
    r = pl.program_id(1)

    # Output block is resident across the reduction axis -> it is the accumulator.
    @pl.when(r == 0)
    def _():
        out_ref[...] = jnp.zeros_like(out_ref)

    s0 = seg_ref[0].astype(jnp.float32)        # (TR, 128)
    s1 = seg_ref[1].astype(jnp.float32)        # (TR, 128)
    e = edge_ref[...].astype(jnp.float32)      # (TR, 128)
    t = target_ref[...]                        # (TR, 128) int32
    b = boundary_ref[...]                      # (TR, 128) int32

    valid = t != ignore_label
    is0 = t == 0

    # ---- SegLoss: 2-class weighted CE via stable softplus(+/-(s1-s0)) ----
    d = s1 - s0
    z = jnp.where(is0, d, -d)
    nll = jnp.maximum(z, 0.0) + jnp.log1p(jnp.exp(-jnp.abs(z)))
    w = jnp.where(is0, jnp.float32(w0), jnp.float32(w1))
    wv = jnp.where(valid, w, jnp.float32(0.0))

    # ---- BoundaryBCELoss partial sums (log clamped at -100, as in PyTorch) ----
    pos = (b == 1) & valid
    neg = (b == 0) & valid
    log_e = jnp.maximum(jnp.log(e), -100.0)
    log_1me = jnp.maximum(jnp.log1p(-e), -100.0)

    def tile_sum(x):
        # (TR, 128) -> (8, 128): sums whole (8,128) vregs along the (untiled)
        # leading axis -> pure VPU adds, no cross-lane/sublane movement.
        return jnp.sum(x.reshape(-1, 8, 128), axis=0)

    out_ref[0] += tile_sum(wv * nll)
    out_ref[1] += tile_sum(wv)
    out_ref[2] += tile_sum(jnp.where(pos, -log_e, 0.0))
    out_ref[3] += tile_sum(jnp.where(neg, -log_1me, 0.0))
    out_ref[4] += tile_sum(pos.astype(jnp.float32))
    out_ref[5] += tile_sum(neg.astype(jnp.float32))
    out_ref[6] += tile_sum(valid.astype(jnp.float32))


def full_loss(seg, edge, target, boundary, *, ignore_label=IGNORE_LABEL,
              block_rows=1024):
    """seg: (N,2,H,W) float; edge: (N,1,h,w) probs; target/boundary: (N,h,w) int."""
    N, C, H, W = seg.shape
    assert C == 2, "SegLoss class weights are defined for 2 classes"
    h, w = target.shape[1], target.shape[2]
    assert boundary.shape == (N, h, w)
    assert edge.shape == (N, 1, h, w), "edge must match target/boundary spatial size"
    assert block_rows % 8 == 0

    if (H, W) != (h, w):
        # TODO(synk): config.MODEL.ALIGN_CORNERS is external; assuming
        # align_corners=False (half-pixel centers, matching jax.image bilinear).
        seg = jax.image.resize(seg, (N, C, h, w), method="bilinear")

    HW = h * w
    R = pl.cdiv(HW, 128)
    R8 = pl.cdiv(R, 8) * 8                 # keep block sublane dim a multiple of 8
    if R8 <= block_rows:
        TR, Rpad = R8, R8
    else:
        TR = block_rows
        Rpad = pl.cdiv(R8, TR) * TR
    HWpad = Rpad * 128

    # Free reshapes (no transpose); pad only when H*W is not aligned.
    seg_f = seg.reshape(N, C, HW)
    edge_f = edge.reshape(N, HW)
    tgt_f = target.reshape(N, HW).astype(jnp.int32)
    bnd_f = boundary.reshape(N, HW).astype(jnp.int32)
    if HWpad != HW:
        pad = HWpad - HW
        seg_f = jnp.pad(seg_f, ((0, 0), (0, 0), (0, pad)))
        edge_f = jnp.pad(edge_f, ((0, 0), (0, pad)))
        tgt_f = jnp.pad(tgt_f, ((0, 0), (0, pad)), constant_values=ignore_label)
        bnd_f = jnp.pad(bnd_f, ((0, 0), (0, pad)))

    seg_r = seg_f.reshape(N, C, Rpad, 128)
    edge_r = edge_f.reshape(N, Rpad, 128)
    tgt_r = tgt_f.reshape(N, Rpad, 128)
    bnd_r = bnd_f.reshape(N, Rpad, 128)

    kernel = functools.partial(_full_loss_kernel, ignore_label=ignore_label,
                               w0=CLASS_W0, w1=CLASS_W1)

    out = pl.pallas_call(
        kernel,
        out_shape=jax.ShapeDtypeStruct((N, 8, 8, 128), jnp.float32),
        grid_spec=pltpu.PrefetchScalarGridSpec(
            num_scalar_prefetch=0,
            grid=(N, Rpad // TR),
            in_specs=[
                pl.BlockSpec((None, C, TR, 128), lambda n, r: (n, 0, r, 0)),
                pl.BlockSpec((None, TR, 128), lambda n, r: (n, r, 0)),
                pl.BlockSpec((None, TR, 128), lambda n, r: (n, r, 0)),
                pl.BlockSpec((None, TR, 128), lambda n, r: (n, r, 0)),
            ],
            out_specs=pl.BlockSpec((None, 8, 8, 128), lambda n, r: (n, 0, 0, 0)),
        ),
        compiler_params=pltpu.CompilerParams(
            dimension_semantics=("parallel", "arbitrary"),
            vmem_limit_bytes=32 * 1024 * 1024),
    )(seg_r, edge_r, tgt_r, bnd_r)

    sums = jnp.sum(out, axis=(0, 2, 3))                   # (8,) global totals
    seg_sum, segw_sum = sums[0], sums[1]
    pos_nll, neg_nll = sums[2], sums[3]
    pos_cnt, neg_cnt, mask_cnt = sums[4], sums[5], sums[6]

    # SegLoss: nn.CrossEntropyLoss(weight, ignore_index), reduction='mean'
    loss1 = seg_sum / segw_sum

    # BoundaryBCELoss
    num = jnp.maximum(mask_cnt, 1.0)
    pos_weight = neg_cnt / num
    neg_weight = pos_cnt / num
    loss2 = (pos_weight * pos_nll + neg_weight * neg_nll) / num

    # TODO(synk): DualTaskLoss (loss3) and BinaryDiceLoss (loss4) are not defined in
    # the provided source, so they are omitted here (treated as 0).
    return loss1 + 25.0 * loss2


# ---------------------------- pure-JAX references ----------------------------

def _seg_loss_ref(score, target, ignore_label=IGNORE_LABEL):
    N, C, H, W = score.shape
    logits = jnp.transpose(score, (0, 2, 3, 1)).reshape(-1, C).astype(jnp.float32)
    tgt = target.reshape(-1)
    valid = tgt != ignore_label
    tc = jnp.where(valid, tgt, 0)
    logp = jax.nn.log_softmax(logits, axis=-1)
    picked = jnp.take_along_axis(logp, tc[:, None], axis=1)[:, 0]
    wvec = jnp.array([CLASS_W0, CLASS_W1], jnp.float32)
    wsel = wvec[tc] * valid.astype(jnp.float32)
    return jnp.sum(-picked * wsel) / jnp.sum(wsel)


def _boundary_bce_ref(edge, target, boundary, ignore_label=IGNORE_LABEL):
    e = edge[:, 0, :, :].astype(jnp.float32)
    mask = target != ignore_label
    pos = (boundary == 1) & mask
    neg = (boundary == 0) & mask
    num = jnp.maximum(mask.sum(), 1).astype(jnp.float32)
    pos_w = neg.sum().astype(jnp.float32) / num
    neg_w = pos.sum().astype(jnp.float32) / num
    bf = boundary.astype(jnp.float32)
    log_e = jnp.maximum(jnp.log(e), -100.0)
    log_1me = jnp.maximum(jnp.log(1.0 - e), -100.0)
    bce = -(bf * log_e + (1.0 - bf) * log_1me)
    wmap = jnp.where(pos, pos_w, jnp.where(neg, neg_w, 0.0))
    return jnp.sum(wmap * bce) / num


def _full_loss_ref(seg, edge, target, boundary):
    return _seg_loss_ref(seg, target) + 25.0 * _boundary_bce_ref(edge, target, boundary)


if __name__ == "__main__":
    key = jax.random.PRNGKey(0)
    k1, k2, k3, k4, k5 = jax.random.split(key, 5)

    # Case 1: small 16x16 images (exercises the padding path, single grid step).
    N, C, H, W = 2, 2, 16, 16
    seg = jax.random.normal(k1, (N, C, H, W), dtype=jnp.float32)
    edge = jax.nn.sigmoid(jax.random.normal(k2, (N, 1, H, W), dtype=jnp.float32))
    target = jax.random.randint(k3, (N, H, W), 0, 2, dtype=jnp.int32)
    ignore_mask = jax.random.uniform(k4, (N, H, W)) < 0.1
    target = jnp.where(ignore_mask, IGNORE_LABEL, target)
    boundary = jax.random.randint(k5, (N, H, W), 0, 2, dtype=jnp.int32)

    loss = jax.block_until_ready(jax.jit(full_loss)(seg, edge, target, boundary))
    ref = _full_loss_ref(seg, edge, target, boundary)
    assert jnp.allclose(loss, ref, rtol=1e-4, atol=1e-5), (loss, ref)

    # Case 2: 64x64 with tiny block_rows to exercise multi-step accumulation.
    H2 = W2 = 64
    seg2 = jax.random.normal(k1, (N, C, H2, W2), dtype=jnp.float32)
    edge2 = jax.nn.sigmoid(jax.random.normal(k2, (N, 1, H2, W2), dtype=jnp.float32))
    tgt2 = jax.random.randint(k3, (N, H2, W2), 0, 2, dtype=jnp.int32)
    im2 = jax.random.uniform(k4, (N, H2, W2)) < 0.1
    tgt2 = jnp.where(im2, IGNORE_LABEL, tgt2)
    bnd2 = jax.random.randint(k5, (N, H2, W2), 0, 2, dtype=jnp.int32)

    loss2 = jax.block_until_ready(
        jax.jit(functools.partial(full_loss, block_rows=8))(seg2, edge2, tgt2, bnd2))
    ref2 = _full_loss_ref(seg2, edge2, tgt2, bnd2)
    assert jnp.allclose(loss2, ref2, rtol=1e-4, atol=1e-5), (loss2, ref2)

    print("KERNEL_OK")
</pallas_src>

<mosaic_0001>
module attributes {stable_mosaic.version = 11 : i64} {
  func.func @_full_loss_kernel(%arg0: i32, %arg1: i32, %arg2: memref<1x2x8x128xf32, #tpu.memory_space<vmem>>, %arg3: memref<1x8x128xf32, #tpu.memory_space<vmem>>, %arg4: memref<1x8x128xi32, #tpu.memory_space<vmem>>, %arg5: memref<1x8x128xi32, #tpu.memory_space<vmem>>, %arg6: memref<1x8x8x128xf32, #tpu.memory_space<vmem>>) attributes {dimension_semantics = [#tpu.dimension_semantics<parallel>, #tpu.dimension_semantics<arbitrary>], iteration_bounds = array<i64: 2, 1>, scalar_prefetch = 0 : i64, scratch_operands = 0 : i64, tpu.core_type = #tpu.core_type<tc>, window_params = [{transform_indices = @transform_0, window_bounds = array<i64: 1, 2, 8, 128>}, {transform_indices = @transform_1, window_bounds = array<i64: 1, 8, 128>}, {transform_indices = @transform_2, window_bounds = array<i64: 1, 8, 128>}, {transform_indices = @transform_3, window_bounds = array<i64: 1, 8, 128>}, {transform_indices = @transform_4, window_bounds = array<i64: 1, 8, 8, 128>}]} {
    %c0_i32 = arith.constant 0 : i32
    %0 = arith.cmpi eq, %arg1, %c0_i32 : i32
    %1 = arith.extui %0 : i1 to i32
    %c0_i32_0 = arith.constant 0 : i32
    %2 = arith.cmpi ne, %1, %c0_i32_0 : i32
    scf.if %2 {
      %cst_88 = arith.constant 0.000000e+00 : f32
      %119 = vector.broadcast %cst_88 : f32 to vector<8x8x128xf32>
      %c0_89 = arith.constant 0 : index
      %c0_90 = arith.constant 0 : index
      %c0_91 = arith.constant 0 : index
      %c0_92 = arith.constant 0 : index
      %120 = vector.load %arg6[%c0_89, %c0_90, %c0_91, %c0_92] : memref<1x8x8x128xf32, #tpu.memory_space<vmem>>, vector<1x8x8x128xf32>
      %121 = vector.shape_cast %120 : vector<1x8x8x128xf32> to vector<8x8x128xf32>
      %122 = vector.shape_cast %119 : vector<8x8x128xf32> to vector<1x8x8x128xf32>
      tpu.vector_store %arg6[%c0_89, %c0_90, %c0_91, %c0_92], %122 {strides = array<i32>} : memref<1x8x8x128xf32, #tpu.memory_space<vmem>>, vector<1x8x8x128xf32>,
    } else {
    }
    %c0 = arith.constant 0 : index
    %c0_1 = arith.constant 0 : index
    %c0_2 = arith.constant 0 : index
    %c0_3 = arith.constant 0 : index
    %3 = vector.load %arg2[%c0, %c0_1, %c0_2, %c0_3] : memref<1x2x8x128xf32, #tpu.memory_space<vmem>>, vector<1x1x8x128xf32>
    %4 = vector.shape_cast %3 : vector<1x1x8x128xf32> to vector<8x128xf32>
    %c0_4 = arith.constant 0 : index
    %c1 = arith.constant 1 : index
    %c0_5 = arith.constant 0 : index
    %c0_6 = arith.constant 0 : index
    %5 = vector.load %arg2[%c0_4, %c1, %c0_5, %c0_6] : memref<1x2x8x128xf32, #tpu.memory_space<vmem>>, vector<1x1x8x128xf32>
    %6 = vector.shape_cast %5 : vector<1x1x8x128xf32> to vector<8x128xf32>
    %c0_7 = arith.constant 0 : index
    %c0_8 = arith.constant 0 : index
    %c0_9 = arith.constant 0 : index
    %7 = vector.load %arg3[%c0_7, %c0_8, %c0_9] : memref<1x8x128xf32, #tpu.memory_space<vmem>>, vector<1x8x128xf32>
    %8 = vector.shape_cast %7 : vector<1x8x128xf32> to vector<8x128xf32>
    %c0_10 = arith.constant 0 : index
    %c0_11 = arith.constant 0 : index
    %c0_12 = arith.constant 0 : index
    %9 = vector.load %arg4[%c0_10, %c0_11, %c0_12] : memref<1x8x128xi32, #tpu.memory_space<vmem>>, vector<1x8x128xi32>
    %10 = vector.shape_cast %9 : vector<1x8x128xi32> to vector<8x128xi32>
    %c0_13 = arith.constant 0 : index
    %c0_14 = arith.constant 0 : index
    %c0_15 = arith.constant 0 : index
    %11 = vector.load %arg5[%c0_13, %c0_14, %c0_15] : memref<1x8x128xi32, #tpu.memory_space<vmem>>, vector<1x8x128xi32>
    %12 = vector.shape_cast %11 : vector<1x8x128xi32> to vector<8x128xi32>
    %c255_i32 = arith.constant 255 : i32
    %13 = vector.broadcast %c255_i32 : i32 to vector<8x128xi32>
    %14 = arith.cmpi ne, %10, %13 : vector<8x128xi32>
    %c0_i32_16 = arith.constant 0 : i32
    %15 = vector.broadcast %c0_i32_16 : i32 to vector<8x128xi32>
    %16 = arith.cmpi eq, %10, %15 : vector<8x128xi32>
    %17 = arith.subf %6, %4 : vector<8x128xf32>
    %cst = arith.constant 0.000000e+00 : f32
    %18 = vector.broadcast %cst : f32 to vector<8x128xf32>
    %19 = arith.subf %18, %17 : vector<8x128xf32>
    %20 = arith.select %16, %17, %19 : vector<8x128xi1>, vector<8x128xf32>
    %cst_17 = arith.constant 0.000000e+00 : f32
    %21 = vector.broadcast %cst_17 : f32 to vector<8x128xf32>
    %22 = arith.maximumf %20, %21 : vector<8x128xf32>
    %23 = math.absf %20 : vector<8x128xf32>
    %cst_18 = arith.constant 0.000000e+00 : f32
    %24 = vector.broadcast %cst_18 : f32 to vector<8x128xf32>
    %25 = arith.subf %24, %23 : vector<8x128xf32>
    %26 = math.exp %25 : vector<8x128xf32>
    %27 = math.log1p %26 : vector<8x128xf32>
    %28 = arith.addf %22, %27 : vector<8x128xf32>
    %cst_19 = arith.constant 1.500000e-01 : f32
    %cst_20 = arith.constant 8.500000e-01 : f32
    %29 = vector.broadcast %cst_19 : f32 to vector<8x128xf32>
    %30 = vector.broadcast %cst_20 : f32 to vector<8x128xf32>
    %31 = arith.select %16, %29, %30 : vector<8x128xi1>, vector<8x128xf32>
    %cst_21 = arith.constant 0.000000e+00 : f32
    %32 = vector.broadcast %cst_21 : f32 to vector<8x128xf32>
    %33 = arith.select %14, %31, %32 : vector<8x128xi1>, vector<8x128xf32>
    %c1_i32 = arith.constant 1 : i32
    %34 = vector.broadcast %c1_i32 : i32 to vector<8x128xi32>
    %35 = arith.cmpi eq, %12, %34 : vector<8x128xi32>
    %36 = arith.andi %35, %14 : vector<8x128xi1>
    %c0_i32_22 = arith.constant 0 : i32
    %37 = vector.broadcast %c0_i32_22 : i32 to vector<8x128xi32>
    %38 = arith.cmpi eq, %12, %37 : vector<8x128xi32>
    %39 = arith.andi %38, %14 : vector<8x128xi1>
    %40 = math.log %8 : vector<8x128xf32>
    %cst_23 = arith.constant -1.000000e+02 : f32
    %41 = vector.broadcast %cst_23 : f32 to vector<8x128xf32>
    %42 = arith.maximumf %40, %41 : vector<8x128xf32>
    %cst_24 = arith.constant 0.000000e+00 : f32
    %43 = vector.broadcast %cst_24 : f32 to vector<8x128xf32>
    %44 = arith.subf %43, %8 : vector<8x128xf32>
    %45 = math.log1p %44 : vector<8x128xf32>
    %cst_25 = arith.constant -1.000000e+02 : f32
    %46 = vector.broadcast %cst_25 : f32 to vector<8x128xf32>
    %47 = arith.maximumf %45, %46 : vector<8x128xf32>
    %c0_26 = arith.constant 0 : index
    %c0_27 = arith.constant 0 : index
    %c0_28 = arith.constant 0 : index
    %c0_29 = arith.constant 0 : index
    %48 = vector.load %arg6[%c0_26, %c0_27, %c0_28, %c0_29] : memref<1x8x8x128xf32, #tpu.memory_space<vmem>>, vector<1x1x8x128xf32>
    %49 = vector.shape_cast %48 : vector<1x1x8x128xf32> to vector<8x128xf32>
    %50 = arith.mulf %33, %28 : vector<8x128xf32>
    %51 = vector.shape_cast %50 : vector<8x128xf32> to vector<1x8x128xf32>
    %cst_30 = arith.constant dense<0.000000e+00> : vector<8x128xf32>
    %52 = vector.multi_reduction <add>, %51, %cst_30 [0] : vector<1x8x128xf32> to vector<8x128xf32>
    %53 = arith.addf %49, %52 : vector<8x128xf32>
    %c0_31 = arith.constant 0 : index
    %c0_32 = arith.constant 0 : index
    %c0_33 = arith.constant 0 : index
    %c0_34 = arith.constant 0 : index
    %54 = vector.load %arg6[%c0_31, %c0_32, %c0_33, %c0_34] : memref<1x8x8x128xf32, #tpu.memory_space<vmem>>, vector<1x1x8x128xf32>
    %55 = vector.shape_cast %54 : vector<1x1x8x128xf32> to vector<8x128xf32>
    %56 = vector.shape_cast %53 : vector<8x128xf32> to vector<1x1x8x128xf32>
    tpu.vector_store %arg6[%c0_31, %c0_32, %c0_33, %c0_34], %56 {strides = array<i32>} : memref<1x8x8x128xf32, #tpu.memory_space<vmem>>, vector<1x1x8x128xf32>,
    %c0_35 = arith.constant 0 : index
    %c1_36 = arith.constant 1 : index
    %c0_37 = arith.constant 0 : index
    %c0_38 = arith.constant 0 : index
    %57 = vector.load %arg6[%c0_35, %c1_36, %c0_37, %c0_38] : memref<1x8x8x128xf32, #tpu.memory_space<vmem>>, vector<1x1x8x128xf32>
    %58 = vector.shape_cast %57 : vector<1x1x8x128xf32> to vector<8x128xf32>
    %59 = vector.shape_cast %33 : vector<8x128xf32> to vector<1x8x128xf32>
    %cst_39 = arith.constant dense<0.000000e+00> : vector<8x128xf32>
    %60 = vector.multi_reduction <add>, %59, %cst_39 [0] : vector<1x8x128xf32> to vector<8x128xf32>
    %61 = arith.addf %58, %60 : vector<8x128xf32>
    %c0_40 = arith.constant 0 : index
    %c1_41 = arith.constant 1 : index
    %c0_42 = arith.constant 0 : index
    %c0_43 = arith.constant 0 : index
    %62 = vector.load %arg6[%c0_40, %c1_41, %c0_42, %c0_43] : memref<1x8x8x128xf32, #tpu.memory_space<vmem>>, vector<1x1x8x128xf32>
    %63 = vector.shape_cast %62 : vector<1x1x8x128xf32> to vector<8x128xf32>
    %64 = vector.shape_cast %61 : vector<8x128xf32> to vector<1x1x8x128xf32>
    tpu.vector_store %arg6[%c0_40, %c1_41, %c0_42, %c0_43], %64 {strides = array<i32>} : memref<1x8x8x128xf32, #tpu.memory_space<vmem>>, vector<1x1x8x128xf32>,
    %c0_44 = arith.constant 0 : index
    %c2 = arith.constant 2 : index
    %c0_45 = arith.constant 0 : index
    %c0_46 = arith.constant 0 : index
    %65 = vector.load %arg6[%c0_44, %c2, %c0_45, %c0_46] : memref<1x8x8x128xf32, #tpu.memory_space<vmem>>, vector<1x1x8x128xf32>
    %66 = vector.shape_cast %65 : vector<1x1x8x128xf32> to vector<8x128xf32>
    %cst_47 = arith.constant 0.000000e+00 : f32
    %67 = vector.broadcast %cst_47 : f32 to vector<8x128xf32>
    %68 = arith.subf %67, %42 : vector<8x128xf32>
    %cst_48 = arith.constant 0.000000e+00 : f32
    %69 = vector.broadcast %cst_48 : f32 to vector<8x128xf32>
    %70 = arith.select %36, %68, %69 : vector<8x128xi1>, vector<8x128xf32>
    %71 = vector.shape_cast %70 : vector<8x128xf32> to vector<1x8x128xf32>
    %cst_49 = arith.constant dense<0.000000e+00> : vector<8x128xf32>
    %72 = vector.multi_reduction <add>, %71, %cst_49 [0] : vector<1x8x128xf32> to vector<8x128xf32>
    %73 = arith.addf %66, %72 : vector<8x128xf32>
    %c0_50 = arith.constant 0 : index
    %c2_51 = arith.constant 2 : index
    %c0_52 = arith.constant 0 : index
    %c0_53 = arith.constant 0 : index
    %74 = vector.load %arg6[%c0_50, %c2_51, %c0_52, %c0_53] : memref<1x8x8x128xf32, #tpu.memory_space<vmem>>, vector<1x1x8x128xf32>
    %75 = vector.shape_cast %74 : vector<1x1x8x128xf32> to vector<8x128xf32>
    %76 = vector.shape_cast %73 : vector<8x128xf32> to vector<1x1x8x128xf32>
    tpu.vector_store %arg6[%c0_50, %c2_51, %c0_52, %c0_53], %76 {strides = array<i32>} : memref<1x8x8x128xf32, #tpu.memory_space<vmem>>, vector<1x1x8x128xf32>,
    %c0_54 = arith.constant 0 : index
    %c3 = arith.constant 3 : index
    %c0_55 = arith.constant 0 : index
    %c0_56 = arith.constant 0 : index
    %77 = vector.load %arg6[%c0_54, %c3, %c0_55, %c0_56] : memref<1x8x8x128xf32, #tpu.memory_space<vmem>>, vector<1x1x8x128xf32>
    %78 = vector.shape_cast %77 : vector<1x1x8x128xf32> to vector<8x128xf32>
    %cst_57 = arith.constant 0.000000e+00 : f32
    %79 = vector.broadcast %cst_57 : f32 to vector<8x128xf32>
    %80 = arith.subf %79, %47 : vector<8x128xf32>
    %cst_58 = arith.constant 0.000000e+00 : f32
    %81 = vector.broadcast %cst_58 : f32 to vector<8x128xf32>
    %82 = arith.select %39, %80, %81 : vector<8x128xi1>, vector<8x128xf32>
    %83 = vector.shape_cast %82 : vector<8x128xf32> to vector<1x8x128xf32>
    %cst_59 = arith.constant dense<0.000000e+00> : vector<8x128xf32>
    %84 = vector.multi_reduction <add>, %83, %cst_59 [0] : vector<1x8x128xf32> to vector<8x128xf32>
    %85 = arith.addf %78, %84 : vector<8x128xf32>
    %c0_60 = arith.constant 0 : index
    %c3_61 = arith.constant 3 : index
    %c0_62 = arith.constant 0 : index
    %c0_63 = arith.constant 0 : index
    %86 = vector.load %arg6[%c0_60, %c3_61, %c0_62, %c0_63] : memref<1x8x8x128xf32, #tpu.memory_space<vmem>>, vector<1x1x8x128xf32>
    %87 = vector.shape_cast %86 : vector<1x1x8x128xf32> to vector<8x128xf32>
    %88 = vector.shape_cast %85 : vector<8x128xf32> to vector<1x1x8x128xf32>
    tpu.vector_store %arg6[%c0_60, %c3_61, %c0_62, %c0_63], %88 {strides = array<i32>} : memref<1x8x8x128xf32, #tpu.memory_space<vmem>>, vector<1x1x8x128xf32>,
    %c0_64 = arith.constant 0 : index
    %c4 = arith.constant 4 : index
    %c0_65 = arith.constant 0 : index
    %c0_66 = arith.constant 0 : index
    %89 = vector.load %arg6[%c0_64, %c4, %c0_65, %c0_66] : memref<1x8x8x128xf32, #tpu.memory_space<vmem>>, vector<1x1x8x128xf32>
    %90 = vector.shape_cast %89 : vector<1x1x8x128xf32> to vector<8x128xf32>
    %91 = arith.extui %36 : vector<8x128xi1> to vector<8x128xi32>
    %92 = arith.sitofp %91 : vector<8x128xi32> to vector<8x128xf32>
    %93 = vector.shape_cast %92 : vector<8x128xf32> to vector<1x8x128xf32>
    %cst_67 = arith.constant dense<0.000000e+00> : vector<8x128xf32>
    %94 = vector.multi_reduction <add>, %93, %cst_67 [0] : vector<1x8x128xf32> to vector<8x128xf32>
    %95 = arith.addf %90, %94 : vector<8x128xf32>
    %c0_68 = arith.constant 0 : index
    %c4_69 = arith.constant 4 : index
    %c0_70 = arith.constant 0 : index
    %c0_71 = arith.constant 0 : index
    %96 = vector.load %arg6[%c0_68, %c4_69, %c0_70, %c0_71] : memref<1x8x8x128xf32, #tpu.memory_space<vmem>>, vector<1x1x8x128xf32>
    %97 = vector.shape_cast %96 : vector<1x1x8x128xf32> to vector<8x128xf32>
    %98 = vector.shape_cast %95 : vector<8x128xf32> to vector<1x1x8x128xf32>
    tpu.vector_store %arg6[%c0_68, %c4_69, %c0_70, %c0_71], %98 {strides = array<i32>} : memref<1x8x8x128xf32, #tpu.memory_space<vmem>>, vector<1x1x8x128xf32>,
    %c0_72 = arith.constant 0 : index
    %c5 = arith.constant 5 : index
    %c0_73 = arith.constant 0 : index
    %c0_74 = arith.constant 0 : index
    %99 = vector.load %arg6[%c0_72, %c5, %c0_73, %c0_74] : memref<1x8x8x128xf32, #tpu.memory_space<vmem>>, vector<1x1x8x128xf32>
    %100 = vector.shape_cast %99 : vector<1x1x8x128xf32> to vector<8x128xf32>
    %101 = arith.extui %39 : vector<8x128xi1> to vector<8x128xi32>
    %102 = arith.sitofp %101 : vector<8x128xi32> to vector<8x128xf32>
    %103 = vector.shape_cast %102 : vector<8x128xf32> to vector<1x8x128xf32>
    %cst_75 = arith.constant dense<0.000000e+00> : vector<8x128xf32>
    %104 = vector.multi_reduction <add>, %103, %cst_75 [0] : vector<1x8x128xf32> to vector<8x128xf32>
    %105 = arith.addf %100, %104 : vector<8x128xf32>
    %c0_76 = arith.constant 0 : index
    %c5_77 = arith.constant 5 : index
    %c0_78 = arith.constant 0 : index
    %c0_79 = arith.constant 0 : index
    %106 = vector.load %arg6[%c0_76, %c5_77, %c0_78, %c0_79] : memref<1x8x8x128xf32, #tpu.memory_space<vmem>>, vector<1x1x8x128xf32>
    %107 = vector.shape_cast %106 : vector<1x1x8x128xf32> to vector<8x128xf32>
    %108 = vector.shape_cast %105 : vector<8x128xf32> to vector<1x1x8x128xf32>
    tpu.vector_store %arg6[%c0_76, %c5_77, %c0_78, %c0_79], %108 {strides = array<i32>} : memref<1x8x8x128xf32, #tpu.memory_space<vmem>>, vector<1x1x8x128xf32>,
    %c0_80 = arith.constant 0 : index
    %c6 = arith.constant 6 : index
    %c0_81 = arith.constant 0 : index
    %c0_82 = arith.constant 0 : index
    %109 = vector.load %arg6[%c0_80, %c6, %c0_81, %c0_82] : memref<1x8x8x128xf32, #tpu.memory_space<vmem>>, vector<1x1x8x128xf32>
    %110 = vector.shape_cast %109 : vector<1x1x8x128xf32> to vector<8x128xf32>
    %111 = arith.extui %14 : vector<8x128xi1> to vector<8x128xi32>
    %112 = arith.sitofp %111 : vector<8x128xi32> to vector<8x128xf32>
    %113 = vector.shape_cast %112 : vector<8x128xf32> to vector<1x8x128xf32>
    %cst_83 = arith.constant dense<0.000000e+00> : vector<8x128xf32>
    %114 = vector.multi_reduction <add>, %113, %cst_83 [0] : vector<1x8x128xf32> to vector<8x128xf32>
    %115 = arith.addf %110, %114 : vector<8x128xf32>
    %c0_84 = arith.constant 0 : index
    %c6_85 = arith.constant 6 : index
    %c0_86 = arith.constant 0 : index
    %c0_87 = arith.constant 0 : index
    %116 = vector.load %arg6[%c0_84, %c6_85, %c0_86, %c0_87] : memref<1x8x8x128xf32, #tpu.memory_space<vmem>>, vector<1x1x8x128xf32>
    %117 = vector.shape_cast %116 : vector<1x1x8x128xf32> to vector<8x128xf32>
    %118 = vector.shape_cast %115 : vector<8x128xf32> to vector<1x1x8x128xf32>
    tpu.vector_store %arg6[%c0_84, %c6_85, %c0_86, %c0_87], %118 {strides = array<i32>} : memref<1x8x8x128xf32, #tpu.memory_space<vmem>>, vector<1x1x8x128xf32>,
    return
  }
  func.func @transform_0(%arg0: i32, %arg1: i32) -> (i32, i32, i32, i32) {
    %c0_i32 = arith.constant 0 : i32
    %c0_i32_0 = arith.constant 0 : i32
    %c0_i32_1 = arith.constant 0 : i32
    return %arg0, %c0_i32, %arg1, %c0_i32_0 : i32, i32, i32, i32
  }
  func.func @transform_1(%arg0: i32, %arg1: i32) -> (i32, i32, i32) {
    %c0_i32 = arith.constant 0 : i32
    %c0_i32_0 = arith.constant 0 : i32
    return %arg0, %arg1, %c0_i32 : i32, i32, i32
  }
  func.func @transform_2(%arg0: i32, %arg1: i32) -> (i32, i32, i32) {
    %c0_i32 = arith.constant 0 : i32
    %c0_i32_0 = arith.constant 0 : i32
    return %arg0, %arg1, %c0_i32 : i32, i32, i32
  }
  func.func @transform_3(%arg0: i32, %arg1: i32) -> (i32, i32, i32) {
    %c0_i32 = arith.constant 0 : i32
    %c0_i32_0 = arith.constant 0 : i32
    return %arg0, %arg1, %c0_i32 : i32, i32, i32
  }
  func.func @transform_4(%arg0: i32, %arg1: i32) -> (i32, i32, i32, i32) {
    %c0_i32 = arith.constant 0 : i32
    %c0_i32_0 = arith.constant 0 : i32
    %c0_i32_1 = arith.constant 0 : i32
    %c0_i32_2 = arith.constant 0 : i32
    return %arg0, %c0_i32, %c0_i32_0, %c0_i32_1 : i32, i32, i32, i32
  }
}

</mosaic_0001>

<llo_original>
// kernel: full_loss.1
$region0: #{full_loss.1}
  #allocation0 [shape = 'u32[]', space=smem, size = 0x4, offset = 0x4, fixed_abs, tag = 'smem constant byte address 0x4 - core index']
  #allocation1 [shape = 'u32[144,128]{1,0:T(1,128)}', space=vmem, size = 0x12000, scoped, tag = 'internal scratch']
  %s0 = inlined_call_operand.vmem [shape: f32[2,2,8,128], index: 0, kind: input, shape index: {}]
  %s1 = inlined_call_operand.vmem [shape: f32[2,8,128], index: 1, kind: input, shape index: {}]
  %s2 = inlined_call_operand.vmem [shape: s32[2,8,128], index: 2, kind: input, shape index: {}]
  %s3 = inlined_call_operand.vmem [shape: s32[2,8,128], index: 3, kind: input, shape index: {}]
  %s4 = inlined_call_operand.vmem [shape: f32[2,8,8,128], index: 4, kind: output, shape index: {}]
  %s5 = sld [smem:[#allocation0]]
  $region53: #{full_loss.1} parent=0
    _
  %s7 = ssub.s32 1, %s5
  %s8 = scalar_select 0, %s7, %s5
  loop: start=0, step=1, limit=4
  $region2: #{full_loss.1} parent=0 // loop_pre_header
    _
  $region3: #{full_loss.1} parent=0 // loop_header
    %s10 = sphi 0, %s14
    %p11 = scmp.ge.s32.totalorder %s10, 4
    %s17 = sphi 0, %s29
    %s18 = sphi 0, %s25
    %s19 = sphi 0, %s17
    %s20 = sphi 0, %s18
    %s21 = sphi 0, %s19
    %s22 = sphi 0, %s20
    %s34 = sphi 0, %s36
    %s37 = sphi 0, %s34
    %s38 = sphi 0, %s37
    %s54 = sphi 0, %s38
    %s62 = sphi 0, %s64
    %s65 = sphi 0, %s62
    %s66 = sphi 0, %s65
    %s82 = sphi 0, %s66
    %s90 = sphi 0, %s92
    %s93 = sphi 0, %s90
    %s94 = sphi 0, %s93
    %s110 = sphi 0, %s94
    %s118 = sphi 0, %s120
    %s121 = sphi 0, %s118
    %s122 = sphi 0, %s121
    %s138 = sphi 0, %s122
    %s144 = sphi 0, %s146
    %s147 = sphi 0, %s144
    %s148 = sphi 0, %s147
    %s164 = sphi 0, %s148
  $region4: #{full_loss.1} parent=0 // loop_header_branch
    %13 = sbr.rel (%p11) target = $region8
  $region5: #{full_loss.1} parent=0 // loop_body
    %s15 = ssub.s32 %s10, 1
    %s16 = ssub.s32 %s10, 2
    %s23 = sadd.s32 1, %s18
    %p24 = scmp.ge.s32.totalorder %s23, 1
    %s25 = scalar_select %p24, 0, %s23
    %s26 = sadd.s32 1, %s17
    %s27 = scalar_select %p24, %s26, %s17
    %p28 = scmp.ge.s32.totalorder %s27, 2
    %s29 = scalar_select %p28, 0, %s27
    %s30 = ssub.s32 %s17, %s29
    %s31 = ssub.s32 %s18, %s25
    %s32 = sor.u32 %s30, %s31
    %p33 = scmp.eq.s32.totalorder %s32, 0
    %s35 = sadd.s32 %s34, 1
    %s36 = scalar_select %p33, %s34, %s35
    %p39 = pneg %p33
    %p40 = scmp.eq.s32.totalorder %s10, 1
    %p41 = por %p39, %p40
    %p42 = scmp.ne.s32.totalorder %s34, %s37
    %p43 = scmp.eq.s32.totalorder %s10, 0
    %p44 = por %p42, %p43
    %p45 = scmp.ne.s32.totalorder %s34, %s37
    %p46 = scmp.eq.s32.totalorder %s15, 1
    %p47 = por %p45, %p46
    %p48 = scmp.ne.s32.totalorder %s37, %s38
    %p49 = scmp.eq.s32.totalorder %s15, 0
    %p50 = por %p48, %p49
    %p51 = scmp.ne.s32.totalorder %s37, %s38
    %p52 = scmp.eq.s32.totalorder %s16, 1
    %p53 = por %p51, %p52
    %p55 = scmp.ne.s32.totalorder %s38, %s54
    %p56 = scmp.eq.s32.totalorder %s16, 0
    %p57 = por %p55, %p56
    %s58 = ssub.s32 %s17, %s29
    %s59 = ssub.s32 %s18, %s25
    %s60 = sor.u32 %s58, %s59
    %p61 = scmp.eq.s32.totalorder %s60, 0
    %s63 = sadd.s32 %s62, 1
    %s64 = scalar_select %p61, %s62, %s63
    %p67 = pneg %p61
    %p68 = scmp.eq.s32.totalorder %s10, 1
    %p69 = por %p67, %p68
    %p70 = scmp.ne.s32.totalorder %s62, %s65
    %p71 = scmp.eq.s32.totalorder %s10, 0
    %p72 = por %p70, %p71
    %p73 = scmp.ne.s32.totalorder %s62, %s65
    %p74 = scmp.eq.s32.totalorder %s15, 1
    %p75 = por %p73, %p74
    %p76 = scmp.ne.s32.totalorder %s65, %s66
    %p77 = scmp.eq.s32.totalorder %s15, 0
    %p78 = por %p76, %p77
    %p79 = scmp.ne.s32.totalorder %s65, %s66
    %p80 = scmp.eq.s32.totalorder %s16, 1
    %p81 = por %p79, %p80
    %p83 = scmp.ne.s32.totalorder %s66, %s82
    %p84 = scmp.eq.s32.totalorder %s16, 0
    %p85 = por %p83, %p84
    %s86 = ssub.s32 %s17, %s29
    %s87 = ssub.s32 %s18, %s25
    %s88 = sor.u32 %s86, %s87
    %p89 = scmp.eq.s32.totalorder %s88, 0
    %s91 = sadd.s32 %s90, 1
    %s92 = scalar_select %p89, %s90, %s91
    %p95 = pneg %p89
    %p96 = scmp.eq.s32.totalorder %s10, 1
    %p97 = por %p95, %p96
    %p98 = scmp.ne.s32.totalorder %s90, %s93
    %p99 = scmp.eq.s32.totalorder %s10, 0
    %p100 = por %p98, %p99
    %p101 = scmp.ne.s32.totalorder %s90, %s93
    %p102 = scmp.eq.s32.totalorder %s15, 1
    %p103 = por %p101, %p102
    %p104 = scmp.ne.s32.totalorder %s93, %s94
    %p105 = scmp.eq.s32.totalorder %s15, 0
    %p106 = por %p104, %p105
    %p107 = scmp.ne.s32.totalorder %s93, %s94
    %p108 = scmp.eq.s32.totalorder %s16, 1
    %p109 = por %p107, %p108
    %p111 = scmp.ne.s32.totalorder %s94, %s110
    %p112 = scmp.eq.s32.totalorder %s16, 0
    %p113 = por %p111, %p112
    %s114 = ssub.s32 %s17, %s29
    %s115 = ssub.s32 %s18, %s25
    %s116 = sor.u32 %s114, %s115
    %p117 = scmp.eq.s32.totalorder %s116, 0
    %s119 = sadd.s32 %s118, 1
    %s120 = scalar_select %p117, %s118, %s119
    %p123 = pneg %p117
    %p124 = scmp.eq.s32.totalorder %s10, 1
    %p125 = por %p123, %p124
    %p126 = scmp.ne.s32.totalorder %s118, %s121
    %p127 = scmp.eq.s32.totalorder %s10, 0
    %p128 = por %p126, %p127
    %p129 = scmp.ne.s32.totalorder %s118, %s121
    %p130 = scmp.eq.s32.totalorder %s15, 1
    %p131 = por %p129, %p130
    %p132 = scmp.ne.s32.totalorder %s121, %s122
    %p133 = scmp.eq.s32.totalorder %s15, 0
    %p134 = por %p132, %p133
    %p135 = scmp.ne.s32.totalorder %s121, %s122
    %p136 = scmp.eq.s32.totalorder %s16, 1
    %p137 = por %p135, %p136
    %p139 = scmp.ne.s32.totalorder %s122, %s138
    %p140 = scmp.eq.s32.totalorder %s16, 0
    %p141 = por %p139, %p140
    %s142 = ssub.s32 %s17, %s29
    %p143 = scmp.eq.s32.totalorder %s142, 0
    %s145 = sadd.s32 %s144, 1
    %s146 = scalar_select %p143, %s144, %s145
    %p149 = pneg %p143
    %p150 = scmp.eq.s32.totalorder %s10, 1
    %p151 = por %p149, %p150
    %p152 = scmp.ne.s32.totalorder %s144, %s147
    %p153 = scmp.eq.s32.totalorder %s10, 0
    %p154 = por %p152, %p153
    %p155 = scmp.ne.s32.totalorder %s144, %s147
    %p156 = scmp.eq.s32.totalorder %s15, 1
    %p157 = por %p155, %p156
    %p158 = scmp.ne.s32.totalorder %s147, %s148
    %p159 = scmp.eq.s32.totalorder %s15, 0
    %p160 = por %p158, %p159
    %p161 = scmp.ne.s32.totalorder %s147, %s148
    %p162 = scmp.eq.s32.totalorder %s16, 1
    %p163 = por %p161, %p162
    %p165 = scmp.ne.s32.totalorder %s148, %s164
    %p166 = scmp.eq.s32.totalorder %s16, 0
    %p167 = por %p165, %p166
    %p168 = scmp.le.s32.totalorder 1, %s10
    %p169 = scmp.lt.s32.totalorder %s10, 3
    %p170 = pnand %p168, %p169
    %p171 = pneg %p170
    // Predicated region
    $region9: #{full_loss.1} parent=5 // pred_check
      _
    $region10: #{full_loss.1} parent=5 // pred_check_branch
      %173 = sbr.rel (%p170) target = $region12
    $region11: #{full_loss.1} parent=5 // pred_region
      %s174 = ssub.s32 %s10, 1
    $region12: #{full_loss.1} parent=5 // pred_fallthru
      _
    %p175 = scmp.lt.s32.totalorder %s10, 2
    // Predicated region
    $region13: #{full_loss.1} parent=5 // pred_check
      %p176 = pneg %p175
    $region14: #{full_loss.1} parent=5 // pred_check_branch
      %178 = sbr.rel (%p176) target = $region16
    $region15: #{full_loss.1} parent=5 // pred_region
      // Predicated region
      $region17: #{full_loss.1} parent=15 // pred_check
        %p179 = pneg %p44
      $region18: #{full_loss.1} parent=15 // pred_check_branch
        %181 = sbr.rel (%p179) target = $region20
      $region19: #{full_loss.1} parent=15 // pred_region
        %p182 = scmp.lt.s32.totalorder %s17, 1
        %s183 = scalar_select %p182, %s17, 1
        %p184 = scmp.lt.s32.totalorder %s18, 0
        %s185 = scalar_select %p184, %s18, 0
        %s186 = smul.addr %s183, 2
        %s187 = sadd.s32 %s185, %s186
        %s188 = smul.addr %s187, 8
        %s189 = scalar_lea.vmem %s0, %s188
      $region20: #{full_loss.1} parent=15 // pred_fallthru
        _
      // Predicated region
      $region21: #{full_loss.1} parent=15 // pred_check
        %p190 = pneg %p72
      $region22: #{full_loss.1} parent=15 // pred_check_branch
        %192 = sbr.rel (%p190) target = $region24
      $region23: #{full_loss.1} parent=15 // pred_region
        %p193 = scmp.lt.s32.totalorder %s17, 1
        %s194 = scalar_select %p193, %s17, 1
        %p195 = scmp.lt.s32.totalorder %s18, 0
        %s196 = scalar_select %p195, %s18, 0
        %s197 = sadd.s32 %s196, %s194
        %s198 = smul.addr %s197, 8
        %s199 = scalar_lea.vmem %s1, %s198
      $region24: #{full_loss.1} parent=15 // pred_fallthru
        _
      // Predicated region
      $region25: #{full_loss.1} parent=15 // pred_check
        %p200 = pneg %p100
      $region26: #{full_loss.1} parent=15 // pred_check_branch
        %202 = sbr.rel (%p200) target = $region28
      $region27: #{full_loss.1} parent=15 // pred_region
        %p203 = scmp.lt.s32.totalorder %s17, 1
        %s204 = scalar_select %p203, %s17, 1
        %p205 = scmp.lt.s32.totalorder %s18, 0
        %s206 = scalar_select %p205, %s18, 0
        %s207 = sadd.s32 %s206, %s204
        %s208 = smul.addr %s207, 8
        %s209 = scalar_lea.vmem %s2, %s208
      $region28: #{full_loss.1} parent=15 // pred_fallthru
        _
      // Predicated region
      $region29: #{full_loss.1} parent=15 // pred_check
        %p210 = pneg %p128
      $region30: #{full_loss.1} parent=15 // pred_check_branch
        %212 = sbr.rel (%p210) target = $region32
      $region31: #{full_loss.1} parent=15 // pred_region
        %p213 = scmp.lt.s32.totalorder %s17, 1
        %s214 = scalar_select %p213, %s17, 1
        %p215 = scmp.lt.s32.totalorder %s18, 0
        %s216 = scalar_select %p215, %s18, 0
        %s217 = sadd.s32 %s216, %s214
        %s218 = smul.addr %s217, 8
        %s219 = scalar_lea.vmem %s3, %s218
      $region32: #{full_loss.1} parent=15 // pred_fallthru
        _
    $region16: #{full_loss.1} parent=5 // pred_fallthru
      _
    %p220 = scmp.le.s32.totalorder 1, %s10
    %p221 = scmp.lt.s32.totalorder %s10, 3
    %p222 = pnand %p220, %p221
    %p223 = pneg %p222
    // Predicated region
    $region33: #{full_loss.1} parent=5 // pred_check
      _
    $region34: #{full_loss.1} parent=5 // pred_check_branch
      %225 = sbr.rel (%p222) target = $region36
    $region35: #{full_loss.1} parent=5 // pred_region
      %s226 = ssub.s32 %s10, 1
      %p227 = scmp.lt.s32.totalorder %s19, 1
      %s228 = scalar_select %p227, %s19, 1
      %p229 = scmp.lt.s32.totalorder %s20, 0
      %s230 = scalar_select %p229, %s20, 0
      %s231 = smul.addr %s228, 2
      %s232 = sadd.s32 %s230, %s231
      %s233 = smul.addr %s232, 8
      %s234 = scalar_lea.vmem %s0, %s233
      %p235 = pneg %p50
      %p236 = pneg %p47
      %p237 = scmp.lt.s32.totalorder %s19, 1
      %s238 = scalar_select %p237, %s19, 1
      %p239 = scmp.lt.s32.totalorder %s20, 0
      %s240 = scalar_select %p239, %s20, 0
      %s241 = sadd.s32 %s240, %s238
      %s242 = smul.addr %s241, 8
      %s243 = scalar_lea.vmem %s1, %s242
      %p244 = pneg %p78
      %p245 = pneg %p75
      %p246 = scmp.lt.s32.totalorder %s19, 1
      %s247 = scalar_select %p246, %s19, 1
      %p248 = scmp.lt.s32.totalorder %s20, 0
      %s249 = scalar_select %p248, %s20, 0
      %s250 = sadd.s32 %s249, %s247
      %s251 = smul.addr %s250, 8
      %s252 = scalar_lea.vmem %s2, %s251
      %p253 = pneg %p106
      %p254 = pneg %p103
      %p255 = scmp.lt.s32.totalorder %s19, 1
      %s256 = scalar_select %p255, %s19, 1
      %p257 = scmp.lt.s32.totalorder %s20, 0
      %s258 = scalar_select %p257, %s20, 0
      %s259 = sadd.s32 %s258, %s256
      %s260 = smul.addr %s259, 8
      %s261 = scalar_lea.vmem %s3, %s260
      %p262 = pneg %p134
      %p263 = pneg %p131
      %p264 = pneg %p160
      %p265 = pneg %p157
      %p266 = scmp.lt.s32.totalorder %s19, 1
      %s267 = scalar_select %p266, %s19, 1
      %s268 = smul.addr %s267, 8
      %s269 = smul.addr %s268, 8
      %s270 = scalar_lea.vmem %s4, %s269
      %p271 = scmp.lt.s32.totalorder %s19, 1
      %s272 = scalar_select %p271, %s19, 1
      %p273 = scmp.lt.s32.totalorder %s20, 0
      %s274 = scalar_select %p273, %s20, 0
      %s275 = smul.addr %s272, 2
      %s276 = sadd.s32 %s274, %s275
      %s277 = smul.addr %s276, 8
      %s278 = scalar_lea.vmem %s0, %s277
      %p279 = scmp.lt.s32.totalorder %s19, 1
      %s280 = scalar_select %p279, %s19, 1
      %p281 = scmp.lt.s32.totalorder %s20, 0
      %s282 = scalar_select %p281, %s20, 0
      %s283 = sadd.s32 %s282, %s280
      %s284 = smul.addr %s283, 8
      %s285 = scalar_lea.vmem %s1, %s284
      %p286 = scmp.lt.s32.totalorder %s19, 1
      %s287 = scalar_select %p286, %s19, 1
      %p288 = scmp.lt.s32.totalorder %s20, 0
      %s289 = scalar_select %p288, %s20, 0
      %s290 = sadd.s32 %s289, %s287
      %s291 = smul.addr %s290, 8
      %s292 = scalar_lea.vmem %s2, %s291
      %p293 = scmp.lt.s32.totalorder %s19, 1
      %s294 = scalar_select %p293, %s19, 1
      %p295 = scmp.lt.s32.totalorder %s20, 0
      %s296 = scalar_select %p295, %s20, 0
      %s297 = sadd.s32 %s296, %s294
      %s298 = smul.addr %s297, 8
      %s299 = scalar_lea.vmem %s3, %s298
      %p300 = scmp.lt.s32.totalorder %s19, 1
      %s301 = scalar_select %p300, %s19, 1
      %s302 = smul.addr %s301, 8
      %s303 = smul.addr %s302, 8
      %s304 = scalar_lea.vmem %s4, %s303
      %p305 = scmp.eq.s32.totalorder %s20, 0
      // Predicated region
      $region37: #{full_loss.1} parent=35 // pred_check
        %p306 = pneg %p305
      $region38: #{full_loss.1} parent=35 // pred_check_branch
        %308 = sbr.rel (%p306) target = $region40
      $region39: #{full_loss.1} parent=35 // pred_region
        %309 = vst [vmem:[%s304] sm:$0xff] 0.0
        %310 = vst [vmem:[%s304 + $0x8] sm:$0xff] 0.0
        %311 = vst [vmem:[%s304 + $0x10] sm:$0xff] 0.0
        %312 = vst [vmem:[%s304 + $0x18] sm:$0xff] 0.0
        %313 = vst [vmem:[%s304 + $0x20] sm:$0xff] 0.0
        %314 = vst [vmem:[%s304 + $0x28] sm:$0xff] 0.0
        %315 = vst [vmem:[%s304 + $0x30] sm:$0xff] 0.0
        %316 = vst [vmem:[%s304 + $0x38] sm:$0xff] 0.0
      $region40: #{full_loss.1} parent=35 // pred_fallthru
        _
      %v317 = vld [vmem:[%s278] sm:$0xff]
      %s318 = scalar_lea.vmem %s278, 8
      %v319 = vld [vmem:[%s318] sm:$0xff]
      %v320 = vld [vmem:[%s285] sm:$0xff]
      %v321 = vld [vmem:[%s292] sm:$0xff]
      %v322 = vld [vmem:[%s299] sm:$0xff]
      %vm323 = vcmp.ne.s32.totalorder %v321, 255
      %vm324 = vcmp.eq.s32.totalorder %v321, 0
      %v325 = vsub.f32 %v319, %v317
      %v326 = vsub.f32 0.0, %v325
      %v327 = vsel %vm324, %v325, %v326
      %v328 = vmax.f32 %v327, 0.0
      %v329 = vand.u32 2147483647, %v327
      %v330 = vsub.f32 0.0, %v329
      %v331 = vmul.f32 %v330, 1.442695
      %v332 = vpow.pop %v331
      %v333 = vadd.f32 %v332, 1.0
      %v334 = vlog2.pop %v333
      %v335 = vmul.f32 %v334, 0.6931472
      %v336 = vmul.f32 -0.5, %v332
      %v337 = vadd.f32 %v336, 1.0
      %v338 = vmul.f32 %v337, %v332
      %v339 = vand.u32 2147483647, %v332
      %vm340 = vcmp.lt.f32.partialorder %v339, 0.0004427343
      %v341 = vsel %vm340, %v338, %v335
      %v342 = vadd.f32 %v328, %v341
      %v343 = vsel %vm324, 0.15, 0.85
      %v344 = vsel %vm323, %v343, 0.0
      %vm345 = vcmp.eq.s32.totalorder %v322, 1
      %vm346 = vmand %vm345, %vm323
      %vm347 = vcmp.eq.s32.totalorder %v322, 0
      %vm348 = vmand %vm347, %vm323
      %v349 = vlog2.pop %v320
      %v350 = vmul.f32 %v349, 0.6931472
      %v351 = vmax.f32 %v350, -100.0
      %v352 = vsub.f32 0.0, %v320
      %v353 = vadd.f32 %v352, 1.0
      %v354 = vlog2.pop %v353
      %v355 = vmul.f32 %v354, 0.6931472
      %v356 = vmul.f32 -0.5, %v352
      %v357 = vadd.f32 %v356, 1.0
      %v358 = vmul.f32 %v357, %v352
      %v359 = vand.u32 2147483647, %v352
      %vm360 = vcmp.lt.f32.partialorder %v359, 0.0004427343
      %v361 = vsel %vm360, %v358, %v355
      %v362 = vmax.f32 %v361, -100.0
      %v363 = vld [vmem:[%s304] sm:$0xff]
      %v364 = vmul.f32 %v344, %v342
      %v365 = vadd.f32 %v364, 0.0
      %v366 = vadd.f32 %v363, %v365
      %367 = vst [vmem:[%s304] sm:$0xff] %v366
      %s368 = scalar_lea.vmem %s304, 8
      %v369 = vld [vmem:[%s368] sm:$0xff]
      %v370 = vadd.f32 %v344, 0.0
      %v371 = vadd.f32 %v369, %v370
      %372 = vst [vmem:[%s368] sm:$0xff] %v371
      %s373 = scalar_lea.vmem %s304, 16
      %v374 = vld [vmem:[%s373] sm:$0xff]
      %v375 = vsub.f32 0.0, %v351
      %v376 = vsel %vm346, %v375, 0.0
      %v377 = vadd.f32 %v376, 0.0
      %v378 = vadd.f32 %v374, %v377
      %379 = vst [vmem:[%s373] sm:$0xff] %v378
      %s380 = scalar_lea.vmem %s304, 24
      %v381 = vld [vmem:[%s380] sm:$0xff]
      %v382 = vsub.f32 0.0, %v362
      %v383 = vsel %vm348, %v382, 0.0
      %v384 = vadd.f32 %v383, 0.0
      %v385 = vadd.f32 %v381, %v384
      %386 = vst [vmem:[%s380] sm:$0xff] %v385
      %s387 = scalar_lea.vmem %s304, 32
      %v388 = vld [vmem:[%s387] sm:$0xff]
      %v389 = vsel %vm346, 1, 0
      %v390 = vcvt.s32.f32 %v389
      %v391 = vadd.f32 %v390, 0.0
      %v392 = vadd.f32 %v388, %v391
      %393 = vst [vmem:[%s387] sm:$0xff] %v392
      %s394 = scalar_lea.vmem %s304, 40
      %v395 = vld [vmem:[%s394] sm:$0xff]
      %v396 = vsel %vm348, 1, 0
      %v397 = vcvt.s32.f32 %v396
      %v398 = vadd.f32 %v397, 0.0
      %v399 = vadd.f32 %v395, %v398
      %400 = vst [vmem:[%s394] sm:$0xff] %v399
      %s401 = scalar_lea.vmem %s304, 48
      %v402 = vld [vmem:[%s401] sm:$0xff]
      %v403 = vsel %vm323, 1, 0
      %v404 = vcvt.s32.f32 %v403
      %v405 = vadd.f32 %v404, 0.0
      %v406 = vadd.f32 %v402, %v405
      %407 = vst [vmem:[%s401] sm:$0xff] %v406
      %p408 = scmp.lt.s32.totalorder %s19, 1
      %s409 = scalar_select %p408, %s19, 1
      %s410 = smul.addr %s409, 8
      %s411 = smul.addr %s410, 8
      %s412 = scalar_lea.vmem %s4, %s411
      // Predicated region
      $region41: #{full_loss.1} parent=35 // pred_check
        %p413 = pneg %p157
      $region42: #{full_loss.1} parent=35 // pred_check_branch
        %415 = sbr.rel (%p413) target = $region44
      $region43: #{full_loss.1} parent=35 // pred_region
        _
      $region44: #{full_loss.1} parent=35 // pred_fallthru
        _
    $region36: #{full_loss.1} parent=5 // pred_fallthru
      _
    %p416 = scmp.le.s32.totalorder 2, %s10
    // Predicated region
    $region45: #{full_loss.1} parent=5 // pred_check
      %p417 = pneg %p416
    $region46: #{full_loss.1} parent=5 // pred_check_branch
      %419 = sbr.rel (%p417) target = $region48
    $region47: #{full_loss.1} parent=5 // pred_region
      %s420 = ssub.s32 %s10, 2
      // Predicated region
      $region49: #{full_loss.1} parent=47 // pred_check
        %p421 = pneg %p163
      $region50: #{full_loss.1} parent=47 // pred_check_branch
        %423 = sbr.rel (%p421) target = $region52
      $region51: #{full_loss.1} parent=47 // pred_region
        %p424 = scmp.lt.s32.totalorder %s21, 1
        %s425 = scalar_select %p424, %s21, 1
        %s426 = smul.addr %s425, 8
        %s427 = smul.addr %s426, 8
        %s428 = scalar_lea.vmem %s4, %s427
      $region52: #{full_loss.1} parent=47 // pred_fallthru
        _
    $region48: #{full_loss.1} parent=5 // pred_fallthru
      _
  $region6: #{full_loss.1} parent=0 // loop_footer
    %s14 = sadd.s32 1, %s10
  $region7: #{full_loss.1} parent=0 // loop_footer_branch
    %9 = sbr.rel target = $region3
  $region8: #{full_loss.1} parent=0 // loop_exit
    _

</llo_original>
